<compile_context>
chip_gen: v7x
topology: tpu7x:2x2x1
jax: 0.10.0
libtpu: 0.0.40
codegen_flags: <defaults>
</compile_context>

<pallas_src>
import functools

import jax
import jax.numpy as jnp
from jax import lax
from jax.experimental import pallas as pl
from jax.experimental.pallas import tpu as pltpu


# --------------------------------------------------------------------------
# Fused kernel: [1x1 expand + BN + ReLU6] -> dw3x3 + BN + ReLU6 ->
#               1x1 project + BN [+ identity residual]
# One grid step = (batch image, output-row group).
# --------------------------------------------------------------------------
def _fused_kernel(*refs, stride, has_expand, has_residual, num_groups):
    idx = 0
    x_ref = refs[idx]; idx += 1                          # (1, H, W, Cin)  f32
    if has_expand:
        w_exp_ref, b_exp_ref = refs[idx:idx + 2]; idx += 2
    w_dw_ref, b_dw_ref, w_prj_ref, b_prj_ref = refs[idx:idx + 4]; idx += 4
    o_ref = refs[idx]; idx += 1                          # (1, rg, Wo, Cout)
    hid_ref = refs[idx]                                  # (in_rows, W+2, hid) scratch

    h, w = x_ref.shape[1], x_ref.shape[2]
    rg, wo = o_ref.shape[1], o_ref.shape[2]
    in_rows, hidc = hid_ref.shape[0], hid_ref.shape[2]
    g = pl.program_id(1)

    # Does the last row group's window include the bottom zero-halo row? (static)
    bottom_halo = ((num_groups * rg - 1) * stride + 2) == h + 1

    # ---- Stage A: fill this group's padded hidden window --------------------
    # Left/right zero-halo columns (tiny width-1 stores; the interior stores
    # below never touch them, so the corners stay zero as well).
    zcol = jnp.zeros((in_rows, 1, hidc), hid_ref.dtype)
    hid_ref[pl.ds(0, in_rows), pl.ds(0, 1), :] = zcol
    hid_ref[pl.ds(0, in_rows), pl.ds(w + 1, 1), :] = zcol

    def expand_rows(x_start, n_rows, slot0):
        # 1x1 expand + BN bias + ReLU6 for n_rows input rows, streamed straight
        # into scratch row slots [slot0, slot0 + n_rows) (interior columns).
        xw = x_ref[0, pl.ds(x_start, n_rows), :, :]      # (n_rows, W, Cin) f32
        if has_expand:
            lhs = xw.reshape(n_rows * w, xw.shape[-1]).astype(jnp.bfloat16)
            hm = jnp.dot(lhs, w_exp_ref[...],            # bf16 x bf16 -> f32 acc
                         preferred_element_type=jnp.float32)
            hm = jnp.clip(hm + b_exp_ref[0], 0.0, 6.0).reshape(n_rows, w, hidc)
        else:
            hm = xw                                      # hidden == input
        hid_ref[pl.ds(slot0, n_rows), pl.ds(1, w), :] = hm.astype(hid_ref.dtype)

    def fill(first, last):
        top = first                        # padded row 0 only in group 0's window
        bot = last and bottom_halo
        slot0 = 1 if top else 0
        n_valid = in_rows - (1 if top else 0) - (1 if bot else 0)
        zrow = jnp.zeros((1, w, hidc), hid_ref.dtype)
        if top:
            hid_ref[pl.ds(0, 1), pl.ds(1, w), :] = zrow
        if bot:
            hid_ref[pl.ds(in_rows - 1, 1), pl.ds(1, w), :] = zrow
        expand_rows(g * (rg * stride) - 1 + slot0, n_valid, slot0)

    if num_groups == 1:
        fill(True, True)
    else:
        @pl.when(g == 0)
        def _():
            fill(True, False)

        @pl.when(g == num_groups - 1)
        def _():
            fill(False, True)

        if num_groups > 2:
            @pl.when(jnp.logical_and(g > 0, g < num_groups - 1))
            def _():
                fill(False, False)

    # ---- Stage B: dw3x3 + BN + ReLU6, 1x1 project + BN (+ residual) ---------
    wdw = w_dw_ref[...]                    # (3, 3, hid) f32 (BN scale folded in)
    b_dw = b_dw_ref[0]                     # (hid,)
    w_prj = w_prj_ref[...]                 # (hid, Cout) bf16 (BN scale folded in)
    b_prj = b_prj_ref[0]                   # (Cout,)

    acc = jnp.zeros((rg, wo, hidc), jnp.float32)
    if stride == 1:
        # Contiguous ref-level tap slices (static offsets only, no strides).
        for kh in range(3):
            for kw in range(3):
                tap = hid_ref[pl.ds(kh, rg), pl.ds(kw, wo), :].astype(jnp.float32)
                acc = acc + tap * wdw[kh, kw]
    else:
        # stride 2: de-interleave W into even/odd buffers once per row group so
        # every tap is a contiguous column slice; rows are picked on the cheap
        # untiled leading axis.
        win = hid_ref[...].astype(jnp.float32)           # (in_rows, W+2, hid)
        even = win[:, 0::2, :]
        odd = win[:, 1::2, :]
        srcs = (even, odd, even)
        offs = (0, 0, 1)
        for kh in range(3):
            for kw in range(3):
                tap = srcs[kw][kh:kh + 2 * (rg - 1) + 1:2,
                               offs[kw]:offs[kw] + wo, :]
                acc = acc + tap * wdw[kh, kw]

    hdw = jnp.clip(acc + b_dw, 0.0, 6.0)                 # f32
    y = jnp.dot(hdw.reshape(rg * wo, hidc).astype(jnp.bfloat16), w_prj,
                preferred_element_type=jnp.float32)
    y = (y + b_prj).reshape(rg, wo, o_ref.shape[3])
    if has_residual:
        # identity => stride == 1 and cin == cout: reuse the resident x block.
        y = y + x_ref[0, pl.ds(g * rg, rg), :, :]
    o_ref[0, :, :, :] = y.astype(o_ref.dtype)


def _pick_row_group(ho, wo, requested=None):
    """Largest divisor of ho not exceeding the requested/target group size."""
    if requested is None:
        target = max(1, min(ho, 512 // max(wo, 1)))  # aim for ~512 projection rows
    else:
        target = max(1, min(requested, ho))
    rg = target
    while ho % rg:
        rg -= 1
    return rg


def fused_inverted_residual(x_nhwc, kp, *, stride, has_expand, has_residual,
                            row_group=None):
    n, h, w, cin = x_nhwc.shape
    hidc = kp["w_dw"].shape[-1]
    cout = kp["w_prj"].shape[-1]
    ho = (h - 1) // stride + 1
    wo = (w - 1) // stride + 1
    if has_residual:
        assert stride == 1 and cin == cout
    rg = _pick_row_group(ho, wo, row_group)
    num_groups = ho // rg
    in_rows = (rg - 1) * stride + 3
    hid_dtype = jnp.bfloat16 if has_expand else x_nhwc.dtype

    inputs = [x_nhwc]
    in_specs = [pl.BlockSpec((1, h, w, cin), lambda i, g: (i, 0, 0, 0))]
    if has_expand:
        inputs += [kp["w_exp"], kp["b_exp"]]
        in_specs += [pl.BlockSpec((cin, hidc), lambda i, g: (0, 0)),
                     pl.BlockSpec((1, hidc), lambda i, g: (0, 0))]
    inputs += [kp["w_dw"], kp["b_dw"], kp["w_prj"], kp["b_prj"]]
    in_specs += [pl.BlockSpec((3, 3, hidc), lambda i, g: (0, 0, 0)),
                 pl.BlockSpec((1, hidc), lambda i, g: (0, 0)),
                 pl.BlockSpec((hidc, cout), lambda i, g: (0, 0)),
                 pl.BlockSpec((1, cout), lambda i, g: (0, 0))]

    kern = functools.partial(_fused_kernel, stride=stride, has_expand=has_expand,
                             has_residual=has_residual, num_groups=num_groups)
    return pl.pallas_call(
        kern,
        out_shape=jax.ShapeDtypeStruct((n, ho, wo, cout), x_nhwc.dtype),
        grid=(n, num_groups),
        in_specs=in_specs,
        out_specs=pl.BlockSpec((1, rg, wo, cout), lambda i, g: (i, g, 0, 0)),
        scratch_shapes=[pltpu.VMEM((in_rows, w + 2, hidc), hid_dtype)],
        compiler_params=pltpu.CompilerParams(
            dimension_semantics=("parallel", "parallel"),
            vmem_limit_bytes=32 * 1024 * 1024,   # headroom under v7x's 64 MiB/TC
        ),
    )(*inputs)


# --------------------------------------------------------------------------
# Parameter construction / BN folding (host-side, eval-mode BN)
# --------------------------------------------------------------------------
def _bn_params(key, c):
    k1, k2, k3, k4 = jax.random.split(key, 4)
    gamma = jax.random.uniform(k1, (c,), jnp.float32, 0.5, 1.5)
    beta = 0.1 * jax.random.normal(k2, (c,), jnp.float32)
    mean = 0.1 * jax.random.normal(k3, (c,), jnp.float32)
    var = jax.random.uniform(k4, (c,), jnp.float32, 0.5, 1.5)
    return gamma, beta, mean, var


def _bn_fold(bn, eps=1e-5):
    gamma, beta, mean, var = bn
    scale = gamma / jnp.sqrt(var + eps)
    bias = beta - mean * scale
    return scale, bias


class InvertedResidual:
    """JAX/Pallas port of the PyTorch InvertedResidual forward pass (eval-mode BN)."""

    def __init__(self, key, block_id, inp, oup, stride, expand_ratio):
        assert stride in (1, 2)
        hidden_dim = round(inp * expand_ratio)
        self.stride = stride
        self.expand_ratio = expand_ratio
        self.identity = (stride == 1 and inp == oup)
        self.inp, self.oup, self.hidden = inp, oup, hidden_dim
        keys = jax.random.split(key, 8)

        if expand_ratio == 1:
            # depthwise 3x3 (inp == hidden_dim), then 1x1 project
            self.w_dw = 0.1 * jax.random.normal(keys[0], (3, 3, hidden_dim), jnp.float32)
            self.bn1 = _bn_params(keys[1], hidden_dim)
            self.w_pw = 0.1 * jax.random.normal(keys[2], (hidden_dim, oup), jnp.float32)
            self.bn2 = _bn_params(keys[3], oup)
            s_dw, b_dw = _bn_fold(self.bn1)
            s_pj, b_pj = _bn_fold(self.bn2)
            self.kp = {
                # BN scales folded into weights; MXU weights pre-cast to bf16.
                "w_dw": self.w_dw * s_dw,                                  # f32 (VPU)
                "b_dw": b_dw.reshape(1, -1),
                "w_prj": (self.w_pw * s_pj[None, :]).astype(jnp.bfloat16),
                "b_prj": b_pj.reshape(1, -1),
            }
        else:
            # 1x1 expand, depthwise 3x3, 1x1 project
            self.w_exp = 0.1 * jax.random.normal(keys[0], (inp, hidden_dim), jnp.float32)
            self.bn1 = _bn_params(keys[1], hidden_dim)
            self.w_dw = 0.1 * jax.random.normal(keys[2], (3, 3, hidden_dim), jnp.float32)
            self.bn2 = _bn_params(keys[3], hidden_dim)
            self.w_prj = 0.1 * jax.random.normal(keys[4], (hidden_dim, oup), jnp.float32)
            self.bn3 = _bn_params(keys[5], oup)
            s_e, b_e = _bn_fold(self.bn1)
            s_dw, b_dw = _bn_fold(self.bn2)
            s_pj, b_pj = _bn_fold(self.bn3)
            self.kp = {
                "w_exp": (self.w_exp * s_e[None, :]).astype(jnp.bfloat16),
                "b_exp": b_e.reshape(1, -1),
                "w_dw": self.w_dw * s_dw,                                  # f32 (VPU)
                "b_dw": b_dw.reshape(1, -1),
                "w_prj": (self.w_prj * s_pj[None, :]).astype(jnp.bfloat16),
                "b_prj": b_pj.reshape(1, -1),
            }
            # TODO(synk): APLayer / MyScale (pruning channel-scale) omitted.

    def __call__(self, x_nchw, row_group=None):
        # TODO(synk): NCHW<->NHWC transposes kept at the boundary to match the
        # PyTorch interface; an NHWC-native surrounding network would drop them.
        x = jnp.transpose(x_nchw, (0, 2, 3, 1))          # NCHW -> NHWC
        out = fused_inverted_residual(
            x, self.kp, stride=self.stride,
            has_expand=(self.expand_ratio != 1),
            has_residual=self.identity,
            row_group=row_group)
        return jnp.transpose(out, (0, 3, 1, 2))          # NHWC -> NCHW


# --------------------------------------------------------------------------
# Pure-JAX f32 reference (lax convs) for validation
# --------------------------------------------------------------------------
def _ref_dw(x, w_hwc, bn, stride, relu6):
    c = w_hwc.shape[-1]
    y = lax.conv_general_dilated(
        x, w_hwc.reshape(3, 3, 1, c), (stride, stride), ((1, 1), (1, 1)),
        dimension_numbers=("NHWC", "HWIO", "NHWC"), feature_group_count=c)
    s, b = _bn_fold(bn)
    y = y * s.reshape(1, 1, 1, -1) + b.reshape(1, 1, 1, -1)
    return jnp.clip(y, 0.0, 6.0) if relu6 else y


def _ref_pw(x, w_io, bn, relu6):
    cin, cout = w_io.shape
    y = lax.conv_general_dilated(
        x, w_io.reshape(1, 1, cin, cout), (1, 1), ((0, 0), (0, 0)),
        dimension_numbers=("NHWC", "HWIO", "NHWC"))
    s, b = _bn_fold(bn)
    y = y * s.reshape(1, 1, 1, -1) + b.reshape(1, 1, 1, -1)
    return jnp.clip(y, 0.0, 6.0) if relu6 else y


def _reference(block, x_nchw):
    x = jnp.transpose(x_nchw, (0, 2, 3, 1))
    res = x if block.identity else None
    if block.expand_ratio == 1:
        y = _ref_dw(x, block.w_dw, block.bn1, block.stride, True)
        y = _ref_pw(y, block.w_pw, block.bn2, False)
    else:
        y = _ref_pw(x, block.w_exp, block.bn1, True)
        y = _ref_dw(y, block.w_dw, block.bn2, block.stride, True)
        y = _ref_pw(y, block.w_prj, block.bn3, False)
    if res is not None:
        y = y + res
    return jnp.transpose(y, (0, 3, 1, 2))


if __name__ == "__main__":
    key = jax.random.PRNGKey(0)
    k_x, k_a, k_b, k_c = jax.random.split(key, 4)

    # Small NCHW input consistent with the module's conv stack.
    x = jax.random.normal(k_x, (2, 8, 16, 16), jnp.float32)

    # Tolerance reflects bf16 MXU operands / bf16 hidden scratch with f32
    # accumulation, compared against a pure-f32 lax reference.
    tol = dict(atol=3e-2, rtol=3e-2)

    # expand_ratio == 1 (depthwise + project, identity residual); 4 row groups
    # so first / middle / last halo branches are all exercised.
    block_a = InvertedResidual(k_a, block_id=0, inp=8, oup=8, stride=1, expand_ratio=1)
    out_a = jax.block_until_ready(block_a(x, row_group=4))
    ref_a = _reference(block_a, x)
    assert out_a.shape == (2, 8, 16, 16)
    assert jnp.allclose(out_a, ref_a, **tol)

    # expand_ratio != 1 (expand + depthwise + project, identity residual).
    block_b = InvertedResidual(k_b, block_id=2, inp=8, oup=8, stride=1, expand_ratio=6)
    out_b = jax.block_until_ready(block_b(x))                 # auto row_group (1 group)
    ref_b = _reference(block_b, x)
    assert out_b.shape == (2, 8, 16, 16)
    assert jnp.allclose(out_b, ref_b, **tol)
    out_b4 = jax.block_until_ready(block_b(x, row_group=4))   # 4 groups (halo branches)
    assert jnp.allclose(out_b4, ref_b, **tol)

    # expand_ratio != 1, stride 2, channel change (no residual); 4 row groups.
    block_c = InvertedResidual(k_c, block_id=3, inp=8, oup=16, stride=2, expand_ratio=6)
    out_c = jax.block_until_ready(block_c(x, row_group=2))
    ref_c = _reference(block_c, x)
    assert out_c.shape == (2, 16, 8, 8)
    assert jnp.allclose(out_c, ref_c, **tol)

    print("KERNEL_OK")
</pallas_src>

<mosaic_0001>
module attributes {stable_mosaic.version = 11 : i64} {
  func.func @_fused_kernel(%arg0: i32, %arg1: i32, %arg2: memref<1x16x16x8xf32, #tpu.memory_space<vmem>>, %arg3: memref<3x3x8xf32, #tpu.memory_space<vmem>>, %arg4: memref<1x8xf32, #tpu.memory_space<vmem>>, %arg5: memref<8x8xbf16, #tpu.memory_space<vmem>>, %arg6: memref<1x8xf32, #tpu.memory_space<vmem>>, %arg7: memref<1x4x16x8xf32, #tpu.memory_space<vmem>>, %arg8: memref<6x18x8xf32, #tpu.memory_space<vmem>>) attributes {dimension_semantics = [#tpu.dimension_semantics<parallel>, #tpu.dimension_semantics<parallel>], iteration_bounds = array<i64: 2, 4>, scalar_prefetch = 0 : i64, scratch_operands = 1 : i64, tpu.core_type = #tpu.core_type<tc>, window_params = [{transform_indices = @transform_0, window_bounds = array<i64: 1, 16, 16, 8>}, {pipeline_mode = #tpu.pipeline_mode<synchronous>, transform_indices = @transform_1, window_bounds = array<i64: 3, 3, 8>}, {pipeline_mode = #tpu.pipeline_mode<synchronous>, transform_indices = @transform_2, window_bounds = array<i64: 1, 8>}, {pipeline_mode = #tpu.pipeline_mode<synchronous>, transform_indices = @transform_3, window_bounds = array<i64: 8, 8>}, {pipeline_mode = #tpu.pipeline_mode<synchronous>, transform_indices = @transform_4, window_bounds = array<i64: 1, 8>}, {transform_indices = @transform_5, window_bounds = array<i64: 1, 4, 16, 8>}]} {
    %cst = arith.constant 0.000000e+00 : f32
    %0 = vector.broadcast %cst : f32 to vector<6x1x8xf32>
    %c0 = arith.constant 0 : index
    %c0_0 = arith.constant 0 : index
    %c0_1 = arith.constant 0 : index
    %1 = vector.load %arg8[%c0, %c0_0, %c0_1] : memref<6x18x8xf32, #tpu.memory_space<vmem>>, vector<6x1x8xf32>
    tpu.vector_store %arg8[%c0, %c0_0, %c0_1], %0 {strides = array<i32>} : memref<6x18x8xf32, #tpu.memory_space<vmem>>, vector<6x1x8xf32>,
    %c0_2 = arith.constant 0 : index
    %c17 = arith.constant 17 : index
    %c0_3 = arith.constant 0 : index
    %2 = vector.load %arg8[%c0_2, %c17, %c0_3] : memref<6x18x8xf32, #tpu.memory_space<vmem>>, vector<6x1x8xf32>
    tpu.vector_store %arg8[%c0_2, %c17, %c0_3], %0 {strides = array<i32>} : memref<6x18x8xf32, #tpu.memory_space<vmem>>, vector<6x1x8xf32>,
    %c0_i32 = arith.constant 0 : i32
    %3 = arith.cmpi eq, %arg1, %c0_i32 : i32
    %4 = arith.extui %3 : i1 to i32
    %c0_i32_4 = arith.constant 0 : i32
    %5 = arith.cmpi ne, %4, %c0_i32_4 : i32
    scf.if %5 {
      %cst_54 = arith.constant 0.000000e+00 : f32
      %106 = vector.broadcast %cst_54 : f32 to vector<1x16x8xf32>
      %c0_55 = arith.constant 0 : index
      %c1_56 = arith.constant 1 : index
      %c0_57 = arith.constant 0 : index
      %107 = vector.load %arg8[%c0_55, %c1_56, %c0_57] : memref<6x18x8xf32, #tpu.memory_space<vmem>>, vector<1x16x8xf32>
      tpu.vector_store %arg8[%c0_55, %c1_56, %c0_57], %106 {strides = array<i32>} : memref<6x18x8xf32, #tpu.memory_space<vmem>>, vector<1x16x8xf32>,
      %c4_i32_58 = arith.constant 4 : i32
      %108 = arith.muli %arg1, %c4_i32_58 : i32
      %c1_i32 = arith.constant 1 : i32
      %109 = arith.subi %108, %c1_i32 : i32
      %c1_i32_59 = arith.constant 1 : i32
      %110 = arith.addi %109, %c1_i32_59 : i32
      %c0_60 = arith.constant 0 : index
      %111 = arith.index_cast %110 : i32 to index
      %c0_61 = arith.constant 0 : index
      %c0_62 = arith.constant 0 : index
      %112 = vector.load %arg2[%c0_60, %111, %c0_61, %c0_62] : memref<1x16x16x8xf32, #tpu.memory_space<vmem>>, vector<1x5x16x8xf32>
      %113 = vector.shape_cast %112 : vector<1x5x16x8xf32> to vector<5x16x8xf32>
      %c1_63 = arith.constant 1 : index
      %c1_64 = arith.constant 1 : index
      %c0_65 = arith.constant 0 : index
      %114 = vector.load %arg8[%c1_63, %c1_64, %c0_65] : memref<6x18x8xf32, #tpu.memory_space<vmem>>, vector<5x16x8xf32>
      tpu.vector_store %arg8[%c1_63, %c1_64, %c0_65], %113 {strides = array<i32>} : memref<6x18x8xf32, #tpu.memory_space<vmem>>, vector<5x16x8xf32>,
    } else {
    }
    %c3_i32 = arith.constant 3 : i32
    %6 = arith.cmpi eq, %arg1, %c3_i32 : i32
    %7 = arith.extui %6 : i1 to i32
    %c0_i32_5 = arith.constant 0 : i32
    %8 = arith.cmpi ne, %7, %c0_i32_5 : i32
    scf.if %8 {
      %cst_54 = arith.constant 0.000000e+00 : f32
      %106 = vector.broadcast %cst_54 : f32 to vector<1x16x8xf32>
      %c5 = arith.constant 5 : index
      %c1_55 = arith.constant 1 : index
      %c0_56 = arith.constant 0 : index
      %107 = vector.load %arg8[%c5, %c1_55, %c0_56] : memref<6x18x8xf32, #tpu.memory_space<vmem>>, vector<1x16x8xf32>
      tpu.vector_store %arg8[%c5, %c1_55, %c0_56], %106 {strides = array<i32>} : memref<6x18x8xf32, #tpu.memory_space<vmem>>, vector<1x16x8xf32>,
      %c4_i32_57 = arith.constant 4 : i32
      %108 = arith.muli %arg1, %c4_i32_57 : i32
      %c1_i32 = arith.constant 1 : i32
      %109 = arith.subi %108, %c1_i32 : i32
      %c0_i32_58 = arith.constant 0 : i32
      %110 = arith.addi %109, %c0_i32_58 : i32
      %c0_59 = arith.constant 0 : index
      %111 = arith.index_cast %110 : i32 to index
      %c0_60 = arith.constant 0 : index
      %c0_61 = arith.constant 0 : index
      %112 = vector.load %arg2[%c0_59, %111, %c0_60, %c0_61] : memref<1x16x16x8xf32, #tpu.memory_space<vmem>>, vector<1x5x16x8xf32>
      %113 = vector.shape_cast %112 : vector<1x5x16x8xf32> to vector<5x16x8xf32>
      %c0_62 = arith.constant 0 : index
      %c1_63 = arith.constant 1 : index
      %c0_64 = arith.constant 0 : index
      %114 = vector.load %arg8[%c0_62, %c1_63, %c0_64] : memref<6x18x8xf32, #tpu.memory_space<vmem>>, vector<5x16x8xf32>
      tpu.vector_store %arg8[%c0_62, %c1_63, %c0_64], %113 {strides = array<i32>} : memref<6x18x8xf32, #tpu.memory_space<vmem>>, vector<5x16x8xf32>,
    } else {
    }
    %c0_i32_6 = arith.constant 0 : i32
    %9 = arith.cmpi sgt, %arg1, %c0_i32_6 : i32
    %c3_i32_7 = arith.constant 3 : i32
    %10 = arith.cmpi slt, %arg1, %c3_i32_7 : i32
    %11 = arith.andi %9, %10 : i1
    %12 = arith.extui %11 : i1 to i32
    %c0_i32_8 = arith.constant 0 : i32
    %13 = arith.cmpi ne, %12, %c0_i32_8 : i32
    scf.if %13 {
      %c4_i32_54 = arith.constant 4 : i32
      %106 = arith.muli %arg1, %c4_i32_54 : i32
      %c1_i32 = arith.constant 1 : i32
      %107 = arith.subi %106, %c1_i32 : i32
      %c0_i32_55 = arith.constant 0 : i32
      %108 = arith.addi %107, %c0_i32_55 : i32
      %c0_56 = arith.constant 0 : index
      %109 = arith.index_cast %108 : i32 to index
      %c0_57 = arith.constant 0 : index
      %c0_58 = arith.constant 0 : index
      %110 = vector.load %arg2[%c0_56, %109, %c0_57, %c0_58] : memref<1x16x16x8xf32, #tpu.memory_space<vmem>>, vector<1x6x16x8xf32>
      %111 = vector.shape_cast %110 : vector<1x6x16x8xf32> to vector<6x16x8xf32>
      %c0_59 = arith.constant 0 : index
      %c1_60 = arith.constant 1 : index
      %c0_61 = arith.constant 0 : index
      %112 = vector.load %arg8[%c0_59, %c1_60, %c0_61] : memref<6x18x8xf32, #tpu.memory_space<vmem>>, vector<6x16x8xf32>
      tpu.vector_store %arg8[%c0_59, %c1_60, %c0_61], %111 {strides = array<i32>} : memref<6x18x8xf32, #tpu.memory_space<vmem>>, vector<6x16x8xf32>,
    } else {
    }
    %c0_9 = arith.constant 0 : index
    %c0_10 = arith.constant 0 : index
    %c0_11 = arith.constant 0 : index
    %14 = vector.load %arg3[%c0_9, %c0_10, %c0_11] : memref<3x3x8xf32, #tpu.memory_space<vmem>>, vector<3x3x8xf32>
    %c0_12 = arith.constant 0 : index
    %c0_13 = arith.constant 0 : index
    %15 = vector.load %arg4[%c0_12, %c0_13] : memref<1x8xf32, #tpu.memory_space<vmem>>, vector<1x8xf32>
    %16 = vector.shape_cast %15 : vector<1x8xf32> to vector<8xf32>
    %c0_14 = arith.constant 0 : index
    %c0_15 = arith.constant 0 : index
    %17 = vector.load %arg5[%c0_14, %c0_15] : memref<8x8xbf16, #tpu.memory_space<vmem>>, vector<8x8xbf16>
    %c0_16 = arith.constant 0 : index
    %c0_17 = arith.constant 0 : index
    %18 = vector.load %arg6[%c0_16, %c0_17] : memref<1x8xf32, #tpu.memory_space<vmem>>, vector<1x8xf32>
    %19 = vector.shape_cast %18 : vector<1x8xf32> to vector<8xf32>
    %cst_18 = arith.constant 0.000000e+00 : f32
    %20 = vector.broadcast %cst_18 : f32 to vector<4x16x8xf32>
    %c0_19 = arith.constant 0 : index
    %c0_20 = arith.constant 0 : index
    %c0_21 = arith.constant 0 : index
    %21 = vector.load %arg8[%c0_19, %c0_20, %c0_21] : memref<6x18x8xf32, #tpu.memory_space<vmem>>, vector<4x16x8xf32>
    %22 = vector.extract_strided_slice %14 {offsets = [0, 0, 0], sizes = [1, 1, 8], strides = [1, 1, 1]} : vector<3x3x8xf32> to vector<1x1x8xf32>
    %23 = vector.shape_cast %22 : vector<1x1x8xf32> to vector<8xf32>
    %24 = vector.shape_cast %23 : vector<8xf32> to vector<1x1x8xf32>
    %25 = vector.broadcast %24 : vector<1x1x8xf32> to vector<4x16x8xf32>
    %26 = arith.mulf %21, %25 : vector<4x16x8xf32>
    %27 = arith.addf %20, %26 : vector<4x16x8xf32>
    %c0_22 = arith.constant 0 : index
    %c1 = arith.constant 1 : index
    %c0_23 = arith.constant 0 : index
    %28 = vector.load %arg8[%c0_22, %c1, %c0_23] : memref<6x18x8xf32, #tpu.memory_space<vmem>>, vector<4x16x8xf32>
    %29 = vector.extract_strided_slice %14 {offsets = [0, 1, 0], sizes = [1, 1, 8], strides = [1, 1, 1]} : vector<3x3x8xf32> to vector<1x1x8xf32>
    %30 = vector.shape_cast %29 : vector<1x1x8xf32> to vector<8xf32>
    %31 = vector.shape_cast %30 : vector<8xf32> to vector<1x1x8xf32>
    %32 = vector.broadcast %31 : vector<1x1x8xf32> to vector<4x16x8xf32>
    %33 = arith.mulf %28, %32 : vector<4x16x8xf32>
    %34 = arith.addf %27, %33 : vector<4x16x8xf32>
    %c0_24 = arith.constant 0 : index
    %c2 = arith.constant 2 : index
    %c0_25 = arith.constant 0 : index
    %35 = vector.load %arg8[%c0_24, %c2, %c0_25] : memref<6x18x8xf32, #tpu.memory_space<vmem>>, vector<4x16x8xf32>
    %36 = vector.extract_strided_slice %14 {offsets = [0, 2, 0], sizes = [1, 1, 8], strides = [1, 1, 1]} : vector<3x3x8xf32> to vector<1x1x8xf32>
    %37 = vector.shape_cast %36 : vector<1x1x8xf32> to vector<8xf32>
    %38 = vector.shape_cast %37 : vector<8xf32> to vector<1x1x8xf32>
    %39 = vector.broadcast %38 : vector<1x1x8xf32> to vector<4x16x8xf32>
    %40 = arith.mulf %35, %39 : vector<4x16x8xf32>
    %41 = arith.addf %34, %40 : vector<4x16x8xf32>
    %c1_26 = arith.constant 1 : index
    %c0_27 = arith.constant 0 : index
    %c0_28 = arith.constant 0 : index
    %42 = vector.load %arg8[%c1_26, %c0_27, %c0_28] : memref<6x18x8xf32, #tpu.memory_space<vmem>>, vector<4x16x8xf32>
    %43 = vector.extract_strided_slice %14 {offsets = [1, 0, 0], sizes = [1, 1, 8], strides = [1, 1, 1]} : vector<3x3x8xf32> to vector<1x1x8xf32>
    %44 = vector.shape_cast %43 : vector<1x1x8xf32> to vector<8xf32>
    %45 = vector.shape_cast %44 : vector<8xf32> to vector<1x1x8xf32>
    %46 = vector.broadcast %45 : vector<1x1x8xf32> to vector<4x16x8xf32>
    %47 = arith.mulf %42, %46 : vector<4x16x8xf32>
    %48 = arith.addf %41, %47 : vector<4x16x8xf32>
    %c1_29 = arith.constant 1 : index
    %c1_30 = arith.constant 1 : index
    %c0_31 = arith.constant 0 : index
    %49 = vector.load %arg8[%c1_29, %c1_30, %c0_31] : memref<6x18x8xf32, #tpu.memory_space<vmem>>, vector<4x16x8xf32>
    %50 = vector.extract_strided_slice %14 {offsets = [1, 1, 0], sizes = [1, 1, 8], strides = [1, 1, 1]} : vector<3x3x8xf32> to vector<1x1x8xf32>
    %51 = vector.shape_cast %50 : vector<1x1x8xf32> to vector<8xf32>
    %52 = vector.shape_cast %51 : vector<8xf32> to vector<1x1x8xf32>
    %53 = vector.broadcast %52 : vector<1x1x8xf32> to vector<4x16x8xf32>
    %54 = arith.mulf %49, %53 : vector<4x16x8xf32>
    %55 = arith.addf %48, %54 : vector<4x16x8xf32>
    %c1_32 = arith.constant 1 : index
    %c2_33 = arith.constant 2 : index
    %c0_34 = arith.constant 0 : index
    %56 = vector.load %arg8[%c1_32, %c2_33, %c0_34] : memref<6x18x8xf32, #tpu.memory_space<vmem>>, vector<4x16x8xf32>
    %57 = vector.extract_strided_slice %14 {offsets = [1, 2, 0], sizes = [1, 1, 8], strides = [1, 1, 1]} : vector<3x3x8xf32> to vector<1x1x8xf32>
    %58 = vector.shape_cast %57 : vector<1x1x8xf32> to vector<8xf32>
    %59 = vector.shape_cast %58 : vector<8xf32> to vector<1x1x8xf32>
    %60 = vector.broadcast %59 : vector<1x1x8xf32> to vector<4x16x8xf32>
    %61 = arith.mulf %56, %60 : vector<4x16x8xf32>
    %62 = arith.addf %55, %61 : vector<4x16x8xf32>
    %c2_35 = arith.constant 2 : index
    %c0_36 = arith.constant 0 : index
    %c0_37 = arith.constant 0 : index
    %63 = vector.load %arg8[%c2_35, %c0_36, %c0_37] : memref<6x18x8xf32, #tpu.memory_space<vmem>>, vector<4x16x8xf32>
    %64 = vector.extract_strided_slice %14 {offsets = [2, 0, 0], sizes = [1, 1, 8], strides = [1, 1, 1]} : vector<3x3x8xf32> to vector<1x1x8xf32>
    %65 = vector.shape_cast %64 : vector<1x1x8xf32> to vector<8xf32>
    %66 = vector.shape_cast %65 : vector<8xf32> to vector<1x1x8xf32>
    %67 = vector.broadcast %66 : vector<1x1x8xf32> to vector<4x16x8xf32>
    %68 = arith.mulf %63, %67 : vector<4x16x8xf32>
    %69 = arith.addf %62, %68 : vector<4x16x8xf32>
    %c2_38 = arith.constant 2 : index
    %c1_39 = arith.constant 1 : index
    %c0_40 = arith.constant 0 : index
    %70 = vector.load %arg8[%c2_38, %c1_39, %c0_40] : memref<6x18x8xf32, #tpu.memory_space<vmem>>, vector<4x16x8xf32>
    %71 = vector.extract_strided_slice %14 {offsets = [2, 1, 0], sizes = [1, 1, 8], strides = [1, 1, 1]} : vector<3x3x8xf32> to vector<1x1x8xf32>
    %72 = vector.shape_cast %71 : vector<1x1x8xf32> to vector<8xf32>
    %73 = vector.shape_cast %72 : vector<8xf32> to vector<1x1x8xf32>
    %74 = vector.broadcast %73 : vector<1x1x8xf32> to vector<4x16x8xf32>
    %75 = arith.mulf %70, %74 : vector<4x16x8xf32>
    %76 = arith.addf %69, %75 : vector<4x16x8xf32>
    %c2_41 = arith.constant 2 : index
    %c2_42 = arith.constant 2 : index
    %c0_43 = arith.constant 0 : index
    %77 = vector.load %arg8[%c2_41, %c2_42, %c0_43] : memref<6x18x8xf32, #tpu.memory_space<vmem>>, vector<4x16x8xf32>
    %78 = vector.extract_strided_slice %14 {offsets = [2, 2, 0], sizes = [1, 1, 8], strides = [1, 1, 1]} : vector<3x3x8xf32> to vector<1x1x8xf32>
    %79 = vector.shape_cast %78 : vector<1x1x8xf32> to vector<8xf32>
    %80 = vector.shape_cast %79 : vector<8xf32> to vector<1x1x8xf32>
    %81 = vector.broadcast %80 : vector<1x1x8xf32> to vector<4x16x8xf32>
    %82 = arith.mulf %77, %81 : vector<4x16x8xf32>
    %83 = arith.addf %76, %82 : vector<4x16x8xf32>
    %84 = vector.shape_cast %16 : vector<8xf32> to vector<1x1x8xf32>
    %85 = vector.broadcast %84 : vector<1x1x8xf32> to vector<4x16x8xf32>
    %86 = arith.addf %83, %85 : vector<4x16x8xf32>
    %cst_44 = arith.constant 0.000000e+00 : f32
    %cst_45 = arith.constant 6.000000e+00 : f32
    %87 = vector.broadcast %cst_44 : f32 to vector<4x16x8xf32>
    %88 = arith.maximumf %87, %86 : vector<4x16x8xf32>
    %89 = vector.broadcast %cst_45 : f32 to vector<4x16x8xf32>
    %90 = arith.minimumf %89, %88 : vector<4x16x8xf32>
    %91 = vector.shape_cast %90 : vector<4x16x8xf32> to vector<64x8xf32>
    %92 = arith.truncf %91 : vector<64x8xf32> to vector<64x8xbf16>
    %cst_46 = arith.constant dense<0.000000e+00> : vector<64x8xf32>
    %93 = tpu.matmul %92, %17, %cst_46 {dimension_numbers = #tpu.dot_dimension_numbers<[1], [0], [0], [1], [0, 0, 1, 1], [], []>} : vector<64x8xbf16>, vector<8x8xbf16>, vector<64x8xf32> -> vector<64x8xf32>
    %94 = vector.shape_cast %19 : vector<8xf32> to vector<1x8xf32>
    %95 = vector.broadcast %94 : vector<1x8xf32> to vector<64x8xf32>
    %96 = arith.addf %93, %95 : vector<64x8xf32>
    %97 = vector.shape_cast %96 : vector<64x8xf32> to vector<4x16x8xf32>
    %c4_i32 = arith.constant 4 : i32
    %98 = arith.muli %arg1, %c4_i32 : i32
    %c0_47 = arith.constant 0 : index
    %99 = arith.index_cast %98 : i32 to index
    %c0_48 = arith.constant 0 : index
    %c0_49 = arith.constant 0 : index
    %100 = vector.load %arg2[%c0_47, %99, %c0_48, %c0_49] : memref<1x16x16x8xf32, #tpu.memory_space<vmem>>, vector<1x4x16x8xf32>
    %101 = vector.shape_cast %100 : vector<1x4x16x8xf32> to vector<4x16x8xf32>
    %102 = arith.addf %97, %101 : vector<4x16x8xf32>
    %c0_50 = arith.constant 0 : index
    %c0_51 = arith.constant 0 : index
    %c0_52 = arith.constant 0 : index
    %c0_53 = arith.constant 0 : index
    %103 = vector.load %arg7[%c0_50, %c0_51, %c0_52, %c0_53] : memref<1x4x16x8xf32, #tpu.memory_space<vmem>>, vector<1x4x16x8xf32>
    %104 = vector.shape_cast %103 : vector<1x4x16x8xf32> to vector<4x16x8xf32>
    %105 = vector.shape_cast %102 : vector<4x16x8xf32> to vector<1x4x16x8xf32>
    tpu.vector_store %arg7[%c0_50, %c0_51, %c0_52, %c0_53], %105 {strides = array<i32>} : memref<1x4x16x8xf32, #tpu.memory_space<vmem>>, vector<1x4x16x8xf32>,
    return
  }
  func.func @transform_0(%arg0: i32, %arg1: i32) -> (i32, i32, i32, i32) {
    %c0_i32 = arith.constant 0 : i32
    %c0_i32_0 = arith.constant 0 : i32
    %c0_i32_1 = arith.constant 0 : i32
    %c0_i32_2 = arith.constant 0 : i32
    return %arg0, %c0_i32, %c0_i32_0, %c0_i32_1 : i32, i32, i32, i32
  }
  func.func @transform_1(%arg0: i32, %arg1: i32) -> (i32, i32, i32) {
    %c0_i32 = arith.constant 0 : i32
    %c0_i32_0 = arith.constant 0 : i32
    %c0_i32_1 = arith.constant 0 : i32
    %c0_i32_2 = arith.constant 0 : i32
    return %c0_i32, %c0_i32_0, %c0_i32_1 : i32, i32, i32
  }
  func.func @transform_2(%arg0: i32, %arg1: i32) -> (i32, i32) {
    %c0_i32 = arith.constant 0 : i32
    %c0_i32_0 = arith.constant 0 : i32
    %c0_i32_1 = arith.constant 0 : i32
    return %c0_i32, %c0_i32_0 : i32, i32
  }
  func.func @transform_3(%arg0: i32, %arg1: i32) -> (i32, i32) {
    %c0_i32 = arith.constant 0 : i32
    %c0_i32_0 = arith.constant 0 : i32
    %c0_i32_1 = arith.constant 0 : i32
    return %c0_i32, %c0_i32_0 : i32, i32
  }
  func.func @transform_4(%arg0: i32, %arg1: i32) -> (i32, i32) {
    %c0_i32 = arith.constant 0 : i32
    %c0_i32_0 = arith.constant 0 : i32
    %c0_i32_1 = arith.constant 0 : i32
    return %c0_i32, %c0_i32_0 : i32, i32
  }
  func.func @transform_5(%arg0: i32, %arg1: i32) -> (i32, i32, i32, i32) {
    %c0_i32 = arith.constant 0 : i32
    %c0_i32_0 = arith.constant 0 : i32
    %c0_i32_1 = arith.constant 0 : i32
    return %arg0, %arg1, %c0_i32, %c0_i32_0 : i32, i32, i32, i32
  }
}

</mosaic_0001>

<llo_original>
// kernel: tpu_custom_call.1
$region0: #{tpu_custom_call.1}
  #allocation0 [shape = 'u32[]', space=smem, size = 0x4, offset = 0x4, fixed_abs, tag = 'smem constant byte address 0x4 - core index']
  #allocation1 [shape = 'u32[144,128]{1,0:T(1,128)}', space=vmem, size = 0x12000, scoped, tag = 'internal scratch']
  #allocation2 [shape = 'f32[6,18,8]{2,1,0:T(8,128)}', space=vmem, size = 0x12000, scoped, tag = 'scratch operand']
  %s0 = inlined_call_operand.vmem [shape: f32[2,16,16,8], index: 0, kind: input, shape index: {}]
  %s1 = inlined_call_operand.vmem [shape: f32[3,3,8], index: 1, kind: input, shape index: {}]
  %s2 = inlined_call_operand.vmem [shape: f32[1,8], index: 2, kind: input, shape index: {}]
  %s3 = inlined_call_operand.vmem [shape: bf16[8,8], index: 3, kind: input, shape index: {}]
  %s4 = inlined_call_operand.vmem [shape: f32[1,8], index: 4, kind: input, shape index: {}]
  %s5 = inlined_call_operand.vmem [shape: f32[2,16,16,8], index: 5, kind: output, shape index: {}]
  %s6 = sld [smem:[#allocation0]]
  $region65: #{tpu_custom_call.1} parent=0
    _
  %s8 = ssub.s32 1, %s6
  %s9 = scalar_select 0, %s8, %s6
  loop: start=0, step=1, limit=10
  $region2: #{tpu_custom_call.1} parent=0 // loop_pre_header
    _
  $region3: #{tpu_custom_call.1} parent=0 // loop_header
    %s11 = sphi 0, %s15
    %p12 = scmp.ge.s32.totalorder %s11, 10
    %s18 = sphi 0, %s30
    %s19 = sphi 0, %s26
    %s20 = sphi 0, %s18
    %s21 = sphi 0, %s19
    %s22 = sphi 0, %s20
    %s23 = sphi 0, %s21
    %s33 = sphi 0, %s35
    %s36 = sphi 0, %s33
    %s37 = sphi 0, %s36
    %s53 = sphi 0, %s37
    %s57 = sphi 0, %s57
    %s59 = sphi 0, %s57
    %s60 = sphi 0, %s59
    %s74 = sphi 0, %s60
    %s78 = sphi 0, %s78
    %s80 = sphi 0, %s78
    %s81 = sphi 0, %s80
    %s95 = sphi 0, %s81
    %s99 = sphi 0, %s99
    %s101 = sphi 0, %s99
    %s102 = sphi 0, %s101
    %s116 = sphi 0, %s102
    %s120 = sphi 0, %s120
    %s122 = sphi 0, %s120
    %s123 = sphi 0, %s122
    %s137 = sphi 0, %s123
    %s145 = sphi 0, %s147
    %s148 = sphi 0, %s145
    %s149 = sphi 0, %s148
    %s165 = sphi 0, %s149
  $region4: #{tpu_custom_call.1} parent=0 // loop_header_branch
    %14 = sbr.rel (%p12) target = $region8
  $region5: #{tpu_custom_call.1} parent=0 // loop_body
    %s16 = ssub.s32 %s11, 1
    %s17 = ssub.s32 %s11, 2
    %s24 = sadd.s32 1, %s19
    %p25 = scmp.ge.s32.totalorder %s24, 4
    %s26 = scalar_select %p25, 0, %s24
    %s27 = sadd.s32 1, %s18
    %s28 = scalar_select %p25, %s27, %s18
    %p29 = scmp.ge.s32.totalorder %s28, 2
    %s30 = scalar_select %p29, 0, %s28
    %s31 = ssub.s32 %s18, %s30
    %p32 = scmp.eq.s32.totalorder %s31, 0
    %s34 = sadd.s32 %s33, 1
    %s35 = scalar_select %p32, %s33, %s34
    %p38 = pneg %p32
    %p39 = scmp.eq.s32.totalorder %s11, 7
    %p40 = por %p38, %p39
    %p41 = scmp.ne.s32.totalorder %s33, %s36
    %p42 = scmp.eq.s32.totalorder %s11, 0
    %p43 = por %p41, %p42
    %p44 = scmp.ne.s32.totalorder %s33, %s36
    %p45 = scmp.eq.s32.totalorder %s16, 7
    %p46 = por %p44, %p45
    %p47 = scmp.ne.s32.totalorder %s36, %s37
    %p48 = scmp.eq.s32.totalorder %s16, 0
    %p49 = por %p47, %p48
    %p50 = scmp.ne.s32.totalorder %s36, %s37
    %p51 = scmp.eq.s32.totalorder %s17, 7
    %p52 = por %p50, %p51
    %p54 = scmp.ne.s32.totalorder %s37, %s53
    %p55 = scmp.eq.s32.totalorder %s17, 0
    %p56 = por %p54, %p55
    %s58 = sadd.s32 %s57, 1
    %p61 = scmp.eq.s32.totalorder %s11, 7
    %p62 = scmp.ne.s32.totalorder %s57, %s59
    %p63 = scmp.eq.s32.totalorder %s11, 0
    %p64 = por %p62, %p63
    %p65 = scmp.ne.s32.totalorder %s57, %s59
    %p66 = scmp.eq.s32.totalorder %s16, 7
    %p67 = por %p65, %p66
    %p68 = scmp.ne.s32.totalorder %s59, %s60
    %p69 = scmp.eq.s32.totalorder %s16, 0
    %p70 = por %p68, %p69
    %p71 = scmp.ne.s32.totalorder %s59, %s60
    %p72 = scmp.eq.s32.totalorder %s17, 7
    %p73 = por %p71, %p72
    %p75 = scmp.ne.s32.totalorder %s60, %s74
    %p76 = scmp.eq.s32.totalorder %s17, 0
    %p77 = por %p75, %p76
    %s79 = sadd.s32 %s78, 1
    %p82 = scmp.eq.s32.totalorder %s11, 7
    %p83 = scmp.ne.s32.totalorder %s78, %s80
    %p84 = scmp.eq.s32.totalorder %s11, 0
    %p85 = por %p83, %p84
    %p86 = scmp.ne.s32.totalorder %s78, %s80
    %p87 = scmp.eq.s32.totalorder %s16, 7
    %p88 = por %p86, %p87
    %p89 = scmp.ne.s32.totalorder %s80, %s81
    %p90 = scmp.eq.s32.totalorder %s16, 0
    %p91 = por %p89, %p90
    %p92 = scmp.ne.s32.totalorder %s80, %s81
    %p93 = scmp.eq.s32.totalorder %s17, 7
    %p94 = por %p92, %p93
    %p96 = scmp.ne.s32.totalorder %s81, %s95
    %p97 = scmp.eq.s32.totalorder %s17, 0
    %p98 = por %p96, %p97
    %s100 = sadd.s32 %s99, 1
    %p103 = scmp.eq.s32.totalorder %s11, 7
    %p104 = scmp.ne.s32.totalorder %s99, %s101
    %p105 = scmp.eq.s32.totalorder %s11, 0
    %p106 = por %p104, %p105
    %p107 = scmp.ne.s32.totalorder %s99, %s101
    %p108 = scmp.eq.s32.totalorder %s16, 7
    %p109 = por %p107, %p108
    %p110 = scmp.ne.s32.totalorder %s101, %s102
    %p111 = scmp.eq.s32.totalorder %s16, 0
    %p112 = por %p110, %p111
    %p113 = scmp.ne.s32.totalorder %s101, %s102
    %p114 = scmp.eq.s32.totalorder %s17, 7
    %p115 = por %p113, %p114
    %p117 = scmp.ne.s32.totalorder %s102, %s116
    %p118 = scmp.eq.s32.totalorder %s17, 0
    %p119 = por %p117, %p118
    %s121 = sadd.s32 %s120, 1
    %p124 = scmp.eq.s32.totalorder %s11, 7
    %p125 = scmp.ne.s32.totalorder %s120, %s122
    %p126 = scmp.eq.s32.totalorder %s11, 0
    %p127 = por %p125, %p126
    %p128 = scmp.ne.s32.totalorder %s120, %s122
    %p129 = scmp.eq.s32.totalorder %s16, 7
    %p130 = por %p128, %p129
    %p131 = scmp.ne.s32.totalorder %s122, %s123
    %p132 = scmp.eq.s32.totalorder %s16, 0
    %p133 = por %p131, %p132
    %p134 = scmp.ne.s32.totalorder %s122, %s123
    %p135 = scmp.eq.s32.totalorder %s17, 7
    %p136 = por %p134, %p135
    %p138 = scmp.ne.s32.totalorder %s123, %s137
    %p139 = scmp.eq.s32.totalorder %s17, 0
    %p140 = por %p138, %p139
    %s141 = ssub.s32 %s18, %s30
    %s142 = ssub.s32 %s19, %s26
    %s143 = sor.u32 %s141, %s142
    %p144 = scmp.eq.s32.totalorder %s143, 0
    %s146 = sadd.s32 %s145, 1
    %s147 = scalar_select %p144, %s145, %s146
    %p150 = pneg %p144
    %p151 = scmp.eq.s32.totalorder %s11, 7
    %p152 = por %p150, %p151
    %p153 = scmp.ne.s32.totalorder %s145, %s148
    %p154 = scmp.eq.s32.totalorder %s11, 0
    %p155 = por %p153, %p154
    %p156 = scmp.ne.s32.totalorder %s145, %s148
    %p157 = scmp.eq.s32.totalorder %s16, 7
    %p158 = por %p156, %p157
    %p159 = scmp.ne.s32.totalorder %s148, %s149
    %p160 = scmp.eq.s32.totalorder %s16, 0
    %p161 = por %p159, %p160
    %p162 = scmp.ne.s32.totalorder %s148, %s149
    %p163 = scmp.eq.s32.totalorder %s17, 7
    %p164 = por %p162, %p163
    %p166 = scmp.ne.s32.totalorder %s149, %s165
    %p167 = scmp.eq.s32.totalorder %s17, 0
    %p168 = por %p166, %p167
    %p169 = scmp.le.s32.totalorder 1, %s11
    %p170 = scmp.lt.s32.totalorder %s11, 9
    %p171 = pnand %p169, %p170
    %p172 = pneg %p171
    // Predicated region
    $region9: #{tpu_custom_call.1} parent=5 // pred_check
      _
    $region10: #{tpu_custom_call.1} parent=5 // pred_check_branch
      %174 = sbr.rel (%p171) target = $region12
    $region11: #{tpu_custom_call.1} parent=5 // pred_region
      %s175 = ssub.s32 %s11, 1
      // Predicated region
      $region13: #{tpu_custom_call.1} parent=11 // pred_check
        %p176 = pneg %p70
      $region14: #{tpu_custom_call.1} parent=11 // pred_check_branch
        %178 = sbr.rel (%p176) target = $region16
      $region15: #{tpu_custom_call.1} parent=11 // pred_region
        _
      $region16: #{tpu_custom_call.1} parent=11 // pred_fallthru
        _
      // Predicated region
      $region17: #{tpu_custom_call.1} parent=11 // pred_check
        %p179 = pneg %p91
      $region18: #{tpu_custom_call.1} parent=11 // pred_check_branch
        %181 = sbr.rel (%p179) target = $region20
      $region19: #{tpu_custom_call.1} parent=11 // pred_region
        _
      $region20: #{tpu_custom_call.1} parent=11 // pred_fallthru
        _
      // Predicated region
      $region21: #{tpu_custom_call.1} parent=11 // pred_check
        %p182 = pneg %p112
      $region22: #{tpu_custom_call.1} parent=11 // pred_check_branch
        %184 = sbr.rel (%p182) target = $region24
      $region23: #{tpu_custom_call.1} parent=11 // pred_region
        _
      $region24: #{tpu_custom_call.1} parent=11 // pred_fallthru
        _
      // Predicated region
      $region25: #{tpu_custom_call.1} parent=11 // pred_check
        %p185 = pneg %p133
      $region26: #{tpu_custom_call.1} parent=11 // pred_check_branch
        %187 = sbr.rel (%p185) target = $region28
      $region27: #{tpu_custom_call.1} parent=11 // pred_region
        _
      $region28: #{tpu_custom_call.1} parent=11 // pred_fallthru
        _
    $region12: #{tpu_custom_call.1} parent=5 // pred_fallthru
      _
    %p188 = scmp.lt.s32.totalorder %s11, 8
    // Predicated region
    $region29: #{tpu_custom_call.1} parent=5 // pred_check
      %p189 = pneg %p188
    $region30: #{tpu_custom_call.1} parent=5 // pred_check_branch
      %191 = sbr.rel (%p189) target = $region32
    $region31: #{tpu_custom_call.1} parent=5 // pred_region
      // Predicated region
      $region33: #{tpu_custom_call.1} parent=31 // pred_check
        %p192 = pneg %p43
      $region34: #{tpu_custom_call.1} parent=31 // pred_check_branch
        %194 = sbr.rel (%p192) target = $region36
      $region35: #{tpu_custom_call.1} parent=31 // pred_region
        %p195 = scmp.lt.s32.totalorder %s18, 1
        %s196 = scalar_select %p195, %s18, 1
        %s197 = smul.addr %s196, 32
        %s198 = smul.addr %s197, 8
        %s199 = scalar_lea.vmem %s0, %s198
      $region36: #{tpu_custom_call.1} parent=31 // pred_fallthru
        _
    $region32: #{tpu_custom_call.1} parent=5 // pred_fallthru
      _
    %p200 = scmp.le.s32.totalorder 1, %s11
    %p201 = scmp.lt.s32.totalorder %s11, 9
    %p202 = pnand %p200, %p201
    %p203 = pneg %p202
    // Predicated region
    $region37: #{tpu_custom_call.1} parent=5 // pred_check
      _
    $region38: #{tpu_custom_call.1} parent=5 // pred_check_branch
      %205 = sbr.rel (%p202) target = $region40
    $region39: #{tpu_custom_call.1} parent=5 // pred_region
      %s206 = ssub.s32 %s11, 1
      %p207 = scmp.lt.s32.totalorder %s20, 1
      %s208 = scalar_select %p207, %s20, 1
      %s209 = smul.addr %s208, 32
      %s210 = smul.addr %s209, 8
      %s211 = scalar_lea.vmem %s0, %s210
      %p212 = pneg %p49
      %p213 = pneg %p46
      %p214 = pneg %p70
      %p215 = pneg %p67
      %p216 = pneg %p91
      %p217 = pneg %p88
      %p218 = pneg %p112
      %p219 = pneg %p109
      %p220 = pneg %p133
      %p221 = pneg %p130
      %p222 = pneg %p161
      %p223 = pneg %p158
      %s224 = smul.u32 4, %s21
      %p225 = scmp.lt.s32.totalorder %s20, 1
      %s226 = scalar_select %p225, %s20, 1
      %p227 = scmp.lt.s32.totalorder %s224, 15
      %s228 = scalar_select %p227, %s224, 15
      %s229 = smul.addr %s228, 2
      %s230 = smul.addr %s226, 32
      %s231 = sadd.s32 %s229, %s230
      %s232 = smul.addr %s231, 8
      %s233 = scalar_lea.vmem %s5, %s232
      %p234 = scmp.lt.s32.totalorder %s20, 1
      %s235 = scalar_select %p234, %s20, 1
      %s236 = smul.addr %s235, 32
      %s237 = smul.addr %s236, 8
      %s238 = scalar_lea.vmem %s0, %s237
      %s239 = smul.u32 4, %s21
      %p240 = scmp.lt.s32.totalorder %s20, 1
      %s241 = scalar_select %p240, %s20, 1
      %p242 = scmp.lt.s32.totalorder %s239, 15
      %s243 = scalar_select %p242, %s239, 15
      %s244 = smul.addr %s243, 2
      %s245 = smul.addr %s241, 32
      %s246 = sadd.s32 %s244, %s245
      %s247 = smul.addr %s246, 8
      %s248 = scalar_lea.vmem %s5, %s247
      %s249 = smul.u32 4, %s21
      %vm251 = vcmask 57344
      %252 = vst.msk [vmem:[#allocation2] sm:$0x1] %vm251, 0.0
      %253 = vst.msk [vmem:[#allocation2 + $0x18] sm:$0x1] %vm251, 0.0
      %254 = vst.msk [vmem:[#allocation2 + $0x30] sm:$0x1] %vm251, 0.0
      %255 = vst.msk [vmem:[#allocation2 + $0x48] sm:$0x1] %vm251, 0.0
      %256 = vst.msk [vmem:[#allocation2 + $0x60] sm:$0x1] %vm251, 0.0
      %257 = vst.msk [vmem:[#allocation2 + $0x78] sm:$0x1] %vm251, 0.0
      %258 = vst.msk [vmem:[#allocation2 + $0x11] sm:$0x1] %vm251, 0.0
      %259 = vst.msk [vmem:[#allocation2 + $0x29] sm:$0x1] %vm251, 0.0
      %260 = vst.msk [vmem:[#allocation2 + $0x41] sm:$0x1] %vm251, 0.0
      %261 = vst.msk [vmem:[#allocation2 + $0x59] sm:$0x1] %vm251, 0.0
      %262 = vst.msk [vmem:[#allocation2 + $0x71] sm:$0x1] %vm251, 0.0
      %263 = vst.msk [vmem:[#allocation2 + $0x89] sm:$0x1] %vm251, 0.0
      %p264 = scmp.eq.s32.totalorder %s21, 0
      // Predicated region
      $region41: #{tpu_custom_call.1} parent=39 // pred_check
        %p265 = pneg %p264
      $region42: #{tpu_custom_call.1} parent=39 // pred_check_branch
        %267 = sbr.rel (%p265) target = $region44
      $region43: #{tpu_custom_call.1} parent=39 // pred_region
        %vm268 = vcmask 64512
        %269 = vst.msk [vmem:[#allocation2 + $0x1] sm:$0xff] %vm268, 0.0
        %270 = vst.msk [vmem:[#allocation2 + $0x9] sm:$0xff] %vm268, 0.0
        %s271 = smul.u32 %s21, 4
        %s272 = smul.u32 %s271, 16
        %s273 = scalar_lea.vmem %s238, %s272
        %v274 = vld [vmem:[%s273] sm:$0xff]
        %v275 = vld [vmem:[%s273 + $0x8] sm:$0xff]
        %v276 = vld [vmem:[%s273 + $0x10] sm:$0xff]
        %v277 = vld [vmem:[%s273 + $0x18] sm:$0xff]
        %v278 = vld [vmem:[%s273 + $0x20] sm:$0xff]
        %v279 = vld [vmem:[%s273 + $0x28] sm:$0xff]
        %v280 = vld [vmem:[%s273 + $0x30] sm:$0xff]
        %v281 = vld [vmem:[%s273 + $0x38] sm:$0xff]
        %v282 = vld [vmem:[%s273 + $0x40] sm:$0xff]
        %v283 = vld [vmem:[%s273 + $0x48] sm:$0xff]
        %s284 = scalar_lea.vmem [#allocation2], 24
        %285 = vst.msk [vmem:[%s284 + $0x1] sm:$0xff] %vm268, %v274
        %286 = vst.msk [vmem:[%s284 + $0x9] sm:$0xff] %vm268, %v275
        %287 = vst.msk [vmem:[%s284 + $0x19] sm:$0xff] %vm268, %v276
        %288 = vst.msk [vmem:[%s284 + $0x21] sm:$0xff] %vm268, %v277
        %289 = vst.msk [vmem:[%s284 + $0x31] sm:$0xff] %vm268, %v278
        %290 = vst.msk [vmem:[%s284 + $0x39] sm:$0xff] %vm268, %v279
        %291 = vst.msk [vmem:[%s284 + $0x49] sm:$0xff] %vm268, %v280
        %292 = vst.msk [vmem:[%s284 + $0x51] sm:$0xff] %vm268, %v281
        %293 = vst.msk [vmem:[%s284 + $0x61] sm:$0xff] %vm268, %v282
        %294 = vst.msk [vmem:[%s284 + $0x69] sm:$0xff] %vm268, %v283
      $region44: #{tpu_custom_call.1} parent=39 // pred_fallthru
        _
      %p295 = scmp.eq.s32.totalorder %s21, 3
      // Predicated region
      $region45: #{tpu_custom_call.1} parent=39 // pred_check
        %p296 = pneg %p295
      $region46: #{tpu_custom_call.1} parent=39 // pred_check_branch
        %298 = sbr.rel (%p296) target = $region48
      $region47: #{tpu_custom_call.1} parent=39 // pred_region
        %s299 = scalar_lea.vmem [#allocation2], 120
        %vm300 = vcmask 64512
        %301 = vst.msk [vmem:[%s299 + $0x1] sm:$0xff] %vm300, 0.0
        %302 = vst.msk [vmem:[%s299 + $0x9] sm:$0xff] %vm300, 0.0
        %s303 = smul.u32 %s21, 4
        %s304 = ssub.s32 %s303, 1
        %s305 = smul.u32 %s304, 16
        %s306 = scalar_lea.vmem %s238, %s305
        %v307 = vld [vmem:[%s306] sm:$0xff]
        %v308 = vld [vmem:[%s306 + $0x8] sm:$0xff]
        %v309 = vld [vmem:[%s306 + $0x10] sm:$0xff]
        %v310 = vld [vmem:[%s306 + $0x18] sm:$0xff]
        %v311 = vld [vmem:[%s306 + $0x20] sm:$0xff]
        %v312 = vld [vmem:[%s306 + $0x28] sm:$0xff]
        %v313 = vld [vmem:[%s306 + $0x30] sm:$0xff]
        %v314 = vld [vmem:[%s306 + $0x38] sm:$0xff]
        %v315 = vld [vmem:[%s306 + $0x40] sm:$0xff]
        %v316 = vld [vmem:[%s306 + $0x48] sm:$0xff]
        %317 = vst.msk [vmem:[#allocation2 + $0x1] sm:$0xff] %vm300, %v307
        %318 = vst.msk [vmem:[#allocation2 + $0x9] sm:$0xff] %vm300, %v308
        %319 = vst.msk [vmem:[#allocation2 + $0x19] sm:$0xff] %vm300, %v309
        %320 = vst.msk [vmem:[#allocation2 + $0x21] sm:$0xff] %vm300, %v310
        %321 = vst.msk [vmem:[#allocation2 + $0x31] sm:$0xff] %vm300, %v311
        %322 = vst.msk [vmem:[#allocation2 + $0x39] sm:$0xff] %vm300, %v312
        %323 = vst.msk [vmem:[#allocation2 + $0x49] sm:$0xff] %vm300, %v313
        %324 = vst.msk [vmem:[#allocation2 + $0x51] sm:$0xff] %vm300, %v314
        %325 = vst.msk [vmem:[#allocation2 + $0x61] sm:$0xff] %vm300, %v315
        %326 = vst.msk [vmem:[#allocation2 + $0x69] sm:$0xff] %vm300, %v316
      $region48: #{tpu_custom_call.1} parent=39 // pred_fallthru
        _
      %p327 = scmp.gt.s32.totalorder %s21, 0
      %p328 = scmp.lt.s32.totalorder %s21, 3
      %p329 = pnand %p327, %p328
      %p330 = pneg %p329
      // Predicated region
      $region49: #{tpu_custom_call.1} parent=39 // pred_check
        _
      $region50: #{tpu_custom_call.1} parent=39 // pred_check_branch
        %332 = sbr.rel (%p329) target = $region52
      $region51: #{tpu_custom_call.1} parent=39 // pred_region
        %s333 = smul.u32 %s21, 4
        %s334 = ssub.s32 %s333, 1
        %s335 = smul.u32 %s334, 16
        %s336 = scalar_lea.vmem %s238, %s335
        %v337 = vld [vmem:[%s336] sm:$0xff]
        %v338 = vld [vmem:[%s336 + $0x8] sm:$0xff]
        %v339 = vld [vmem:[%s336 + $0x10] sm:$0xff]
        %v340 = vld [vmem:[%s336 + $0x18] sm:$0xff]
        %v341 = vld [vmem:[%s336 + $0x20] sm:$0xff]
        %v342 = vld [vmem:[%s336 + $0x28] sm:$0xff]
        %v343 = vld [vmem:[%s336 + $0x30] sm:$0xff]
        %v344 = vld [vmem:[%s336 + $0x38] sm:$0xff]
        %v345 = vld [vmem:[%s336 + $0x40] sm:$0xff]
        %v346 = vld [vmem:[%s336 + $0x48] sm:$0xff]
        %v347 = vld [vmem:[%s336 + $0x50] sm:$0xff]
        %v348 = vld [vmem:[%s336 + $0x58] sm:$0xff]
        %vm349 = vcmask 64512
        %350 = vst.msk [vmem:[#allocation2 + $0x1] sm:$0xff] %vm349, %v337
        %351 = vst.msk [vmem:[#allocation2 + $0x9] sm:$0xff] %vm349, %v338
        %352 = vst.msk [vmem:[#allocation2 + $0x19] sm:$0xff] %vm349, %v339
        %353 = vst.msk [vmem:[#allocation2 + $0x21] sm:$0xff] %vm349, %v340
        %354 = vst.msk [vmem:[#allocation2 + $0x31] sm:$0xff] %vm349, %v341
        %355 = vst.msk [vmem:[#allocation2 + $0x39] sm:$0xff] %vm349, %v342
        %356 = vst.msk [vmem:[#allocation2 + $0x49] sm:$0xff] %vm349, %v343
        %357 = vst.msk [vmem:[#allocation2 + $0x51] sm:$0xff] %vm349, %v344
        %358 = vst.msk [vmem:[#allocation2 + $0x61] sm:$0xff] %vm349, %v345
        %359 = vst.msk [vmem:[#allocation2 + $0x69] sm:$0xff] %vm349, %v346
        %360 = vst.msk [vmem:[#allocation2 + $0x79] sm:$0xff] %vm349, %v347
        %361 = vst.msk [vmem:[#allocation2 + $0x81] sm:$0xff] %vm349, %v348
      $region52: #{tpu_custom_call.1} parent=39 // pred_fallthru
        _
      %v362 = vld [vmem:[%s1] sm:$0x7]
      %v363 = vld [vmem:[%s1 + $0x4] sm:$0x7]
      %v364 = vld [vmem:[%s1 + $0x8] sm:$0x7]
      %v365 = vld [vmem:[%s2] sm:$0x1]
      %v366 = vld [vmem:[%s3] sm:$0xf]
      %v367 = vld [vmem:[%s4] sm:$0x1]
      %v368 = vld [vmem:[#allocation2] sm:$0xff]
      %v369 = vld [vmem:[#allocation2 + $0x8] sm:$0xff]
      %v370 = vld [vmem:[#allocation2 + $0x18] sm:$0xff]
      %v371 = vld [vmem:[#allocation2 + $0x20] sm:$0xff]
      %v372 = vld [vmem:[#allocation2 + $0x30] sm:$0xff]
      %v373 = vld [vmem:[#allocation2 + $0x38] sm:$0xff]
      %v374 = vld [vmem:[#allocation2 + $0x48] sm:$0xff]
      %v375 = vld [vmem:[#allocation2 + $0x50] sm:$0xff]
      %v376 = vlaneseq
      %v377 = vshrl.u32 %v376, 7
      %v378 = vsub.s32 0, %v377
      %v379 = vrot.slane %v362, %v378
      %v380 = vmul.f32 %v368, %v379
      %v381 = vmul.f32 %v369, %v379
      %v382 = vmul.f32 %v370, %v379
      %v383 = vmul.f32 %v371, %v379
      %v384 = vmul.f32 %v372, %v379
      %v385 = vmul.f32 %v373, %v379
      %v386 = vmul.f32 %v374, %v379
      %v387 = vmul.f32 %v375, %v379
      %v388 = vadd.f32 %v380, 0.0
      %v389 = vadd.f32 %v381, 0.0
      %v390 = vadd.f32 %v382, 0.0
      %v391 = vadd.f32 %v383, 0.0
      %v392 = vadd.f32 %v384, 0.0
      %v393 = vadd.f32 %v385, 0.0
      %v394 = vadd.f32 %v386, 0.0
      %v395 = vadd.f32 %v387, 0.0
      %v396 = vld [vmem:[#allocation2 + $0x1] sm:$0xff]
      %v397 = vld [vmem:[#allocation2 + $0x9] sm:$0xff]
      %v398 = vld [vmem:[#allocation2 + $0x19] sm:$0xff]
      %v399 = vld [vmem:[#allocation2 + $0x21] sm:$0xff]
      %v400 = vld [vmem:[#allocation2 + $0x31] sm:$0xff]
      %v401 = vld [vmem:[#allocation2 + $0x39] sm:$0xff]
      %v402 = vld [vmem:[#allocation2 + $0x49] sm:$0xff]
      %v403 = vld [vmem:[#allocation2 + $0x51] sm:$0xff]
      %v404 = vlaneseq
      %v405 = vshrl.u32 %v404, 7
      %v406 = vsub.s32 1, %v405
      %v407 = vrot.slane %v362, %v406
      %v408 = vmul.f32 %v396, %v407
      %v409 = vmul.f32 %v397, %v407
      %v410 = vmul.f32 %v398, %v407
      %v411 = vmul.f32 %v399, %v407
      %v412 = vmul.f32 %v400, %v407
      %v413 = vmul.f32 %v401, %v407
      %v414 = vmul.f32 %v402, %v407
      %v415 = vmul.f32 %v403, %v407
      %v416 = vadd.f32 %v388, %v408
      %v417 = vadd.f32 %v389, %v409
      %v418 = vadd.f32 %v390, %v410
      %v419 = vadd.f32 %v391, %v411
      %v420 = vadd.f32 %v392, %v412
      %v421 = vadd.f32 %v393, %v413
      %v422 = vadd.f32 %v394, %v414
      %v423 = vadd.f32 %v395, %v415
      %v424 = vld [vmem:[#allocation2 + $0x2] sm:$0xff]
      %v425 = vld [vmem:[#allocation2 + $0xa] sm:$0xff]
      %v426 = vld [vmem:[#allocation2 + $0x1a] sm:$0xff]
      %v427 = vld [vmem:[#allocation2 + $0x22] sm:$0xff]
      %v428 = vld [vmem:[#allocation2 + $0x32] sm:$0xff]
      %v429 = vld [vmem:[#allocation2 + $0x3a] sm:$0xff]
      %v430 = vld [vmem:[#allocation2 + $0x4a] sm:$0xff]
      %v431 = vld [vmem:[#allocation2 + $0x52] sm:$0xff]
      %v432 = vlaneseq
      %v433 = vshrl.u32 %v432, 7
      %v434 = vsub.s32 2, %v433
      %v435 = vrot.slane %v362, %v434
      %v436 = vmul.f32 %v424, %v435
      %v437 = vmul.f32 %v425, %v435
      %v438 = vmul.f32 %v426, %v435
      %v439 = vmul.f32 %v427, %v435
      %v440 = vmul.f32 %v428, %v435
      %v441 = vmul.f32 %v429, %v435
      %v442 = vmul.f32 %v430, %v435
      %v443 = vmul.f32 %v431, %v435
      %v444 = vadd.f32 %v416, %v436
      %v445 = vadd.f32 %v417, %v437
      %v446 = vadd.f32 %v418, %v438
      %v447 = vadd.f32 %v419, %v439
      %v448 = vadd.f32 %v420, %v440
      %v449 = vadd.f32 %v421, %v441
      %v450 = vadd.f32 %v422, %v442
      %v451 = vadd.f32 %v423, %v443
      %s452 = scalar_lea.vmem [#allocation2], 24
      %v453 = vld [vmem:[%s452] sm:$0xff]
      %v454 = vld [vmem:[%s452 + $0x8] sm:$0xff]
      %v455 = vld [vmem:[%s452 + $0x18] sm:$0xff]
      %v456 = vld [vmem:[%s452 + $0x20] sm:$0xff]
      %v457 = vld [vmem:[%s452 + $0x30] sm:$0xff]
      %v458 = vld [vmem:[%s452 + $0x38] sm:$0xff]
      %v459 = vld [vmem:[%s452 + $0x48] sm:$0xff]
      %v460 = vld [vmem:[%s452 + $0x50] sm:$0xff]
      %v461 = vlaneseq
      %v462 = vshrl.u32 %v461, 7
      %v463 = vsub.s32 0, %v462
      %v464 = vrot.slane %v363, %v463
      %v465 = vmul.f32 %v453, %v464
      %v466 = vmul.f32 %v454, %v464
      %v467 = vmul.f32 %v455, %v464
      %v468 = vmul.f32 %v456, %v464
      %v469 = vmul.f32 %v457, %v464
      %v470 = vmul.f32 %v458, %v464
      %v471 = vmul.f32 %v459, %v464
      %v472 = vmul.f32 %v460, %v464
      %v473 = vadd.f32 %v444, %v465
      %v474 = vadd.f32 %v445, %v466
      %v475 = vadd.f32 %v446, %v467
      %v476 = vadd.f32 %v447, %v468
      %v477 = vadd.f32 %v448, %v469
      %v478 = vadd.f32 %v449, %v470
      %v479 = vadd.f32 %v450, %v471
      %v480 = vadd.f32 %v451, %v472
      %v481 = vld [vmem:[%s452 + $0x1] sm:$0xff]
      %v482 = vld [vmem:[%s452 + $0x9] sm:$0xff]
      %v483 = vld [vmem:[%s452 + $0x19] sm:$0xff]
      %v484 = vld [vmem:[%s452 + $0x21] sm:$0xff]
      %v485 = vld [vmem:[%s452 + $0x31] sm:$0xff]
      %v486 = vld [vmem:[%s452 + $0x39] sm:$0xff]
      %v487 = vld [vmem:[%s452 + $0x49] sm:$0xff]
      %v488 = vld [vmem:[%s452 + $0x51] sm:$0xff]
      %v489 = vlaneseq
      %v490 = vshrl.u32 %v489, 7
      %v491 = vsub.s32 1, %v490
      %v492 = vrot.slane %v363, %v491
      %v493 = vmul.f32 %v481, %v492
      %v494 = vmul.f32 %v482, %v492
      %v495 = vmul.f32 %v483, %v492
      %v496 = vmul.f32 %v484, %v492
      %v497 = vmul.f32 %v485, %v492
      %v498 = vmul.f32 %v486, %v492
      %v499 = vmul.f32 %v487, %v492
      %v500 = vmul.f32 %v488, %v492
      %v501 = vadd.f32 %v473, %v493
      %v502 = vadd.f32 %v474, %v494
      %v503 = vadd.f32 %v475, %v495
      %v504 = vadd.f32 %v476, %v496
      %v505 = vadd.f32 %v477, %v497
      %v506 = vadd.f32 %v478, %v498
      %v507 = vadd.f32 %v479, %v499
      %v508 = vadd.f32 %v480, %v500
      %v509 = vld [vmem:[%s452 + $0x2] sm:$0xff]
      %v510 = vld [vmem:[%s452 + $0xa] sm:$0xff]
      %v511 = vld [vmem:[%s452 + $0x1a] sm:$0xff]
      %v512 = vld [vmem:[%s452 + $0x22] sm:$0xff]
      %v513 = vld [vmem:[%s452 + $0x32] sm:$0xff]
      %v514 = vld [vmem:[%s452 + $0x3a] sm:$0xff]
      %v515 = vld [vmem:[%s452 + $0x4a] sm:$0xff]
      %v516 = vld [vmem:[%s452 + $0x52] sm:$0xff]
      %v517 = vlaneseq
      %v518 = vshrl.u32 %v517, 7
      %v519 = vsub.s32 2, %v518
      %v520 = vrot.slane %v363, %v519
      %v521 = vmul.f32 %v509, %v520
      %v522 = vmul.f32 %v510, %v520
      %v523 = vmul.f32 %v511, %v520
      %v524 = vmul.f32 %v512, %v520
      %v525 = vmul.f32 %v513, %v520
      %v526 = vmul.f32 %v514, %v520
      %v527 = vmul.f32 %v515, %v520
      %v528 = vmul.f32 %v516, %v520
      %v529 = vadd.f32 %v501, %v521
      %v530 = vadd.f32 %v502, %v522
      %v531 = vadd.f32 %v503, %v523
      %v532 = vadd.f32 %v504, %v524
      %v533 = vadd.f32 %v505, %v525
      %v534 = vadd.f32 %v506, %v526
      %v535 = vadd.f32 %v507, %v527
      %v536 = vadd.f32 %v508, %v528
      %s537 = scalar_lea.vmem [#allocation2], 48
      %v538 = vld [vmem:[%s537] sm:$0xff]
      %v539 = vld [vmem:[%s537 + $0x8] sm:$0xff]
      %v540 = vld [vmem:[%s537 + $0x18] sm:$0xff]
      %v541 = vld [vmem:[%s537 + $0x20] sm:$0xff]
      %v542 = vld [vmem:[%s537 + $0x30] sm:$0xff]
      %v543 = vld [vmem:[%s537 + $0x38] sm:$0xff]
      %v544 = vld [vmem:[%s537 + $0x48] sm:$0xff]
      %v545 = vld [vmem:[%s537 + $0x50] sm:$0xff]
      %v546 = vlaneseq
      %v547 = vshrl.u32 %v546, 7
      %v548 = vsub.s32 0, %v547
      %v549 = vrot.slane %v364, %v548
      %v550 = vmul.f32 %v538, %v549
      %v551 = vmul.f32 %v539, %v549
      %v552 = vmul.f32 %v540, %v549
      %v553 = vmul.f32 %v541, %v549
      %v554 = vmul.f32 %v542, %v549
      %v555 = vmul.f32 %v543, %v549
      %v556 = vmul.f32 %v544, %v549
      %v557 = vmul.f32 %v545, %v549
      %v558 = vadd.f32 %v529, %v550
      %v559 = vadd.f32 %v530, %v551
      %v560 = vadd.f32 %v531, %v552
      %v561 = vadd.f32 %v532, %v553
      %v562 = vadd.f32 %v533, %v554
      %v563 = vadd.f32 %v534, %v555
      %v564 = vadd.f32 %v535, %v556
      %v565 = vadd.f32 %v536, %v557
      %v566 = vld [vmem:[%s537 + $0x1] sm:$0xff]
      %v567 = vld [vmem:[%s537 + $0x9] sm:$0xff]
      %v568 = vld [vmem:[%s537 + $0x19] sm:$0xff]
      %v569 = vld [vmem:[%s537 + $0x21] sm:$0xff]
      %v570 = vld [vmem:[%s537 + $0x31] sm:$0xff]
      %v571 = vld [vmem:[%s537 + $0x39] sm:$0xff]
      %v572 = vld [vmem:[%s537 + $0x49] sm:$0xff]
      %v573 = vld [vmem:[%s537 + $0x51] sm:$0xff]
      %v574 = vlaneseq
      %v575 = vshrl.u32 %v574, 7
      %v576 = vsub.s32 1, %v575
      %v577 = vrot.slane %v364, %v576
      %v578 = vmul.f32 %v566, %v577
      %v579 = vmul.f32 %v567, %v577
      %v580 = vmul.f32 %v568, %v577
      %v581 = vmul.f32 %v569, %v577
      %v582 = vmul.f32 %v570, %v577
      %v583 = vmul.f32 %v571, %v577
      %v584 = vmul.f32 %v572, %v577
      %v585 = vmul.f32 %v573, %v577
      %v586 = vadd.f32 %v558, %v578
      %v587 = vadd.f32 %v559, %v579
      %v588 = vadd.f32 %v560, %v580
      %v589 = vadd.f32 %v561, %v581
      %v590 = vadd.f32 %v562, %v582
      %v591 = vadd.f32 %v563, %v583
      %v592 = vadd.f32 %v564, %v584
      %v593 = vadd.f32 %v565, %v585
      %v594 = vld [vmem:[%s537 + $0x2] sm:$0xff]
      %v595 = vld [vmem:[%s537 + $0xa] sm:$0xff]
      %v596 = vld [vmem:[%s537 + $0x1a] sm:$0xff]
      %v597 = vld [vmem:[%s537 + $0x22] sm:$0xff]
      %v598 = vld [vmem:[%s537 + $0x32] sm:$0xff]
      %v599 = vld [vmem:[%s537 + $0x3a] sm:$0xff]
      %v600 = vld [vmem:[%s537 + $0x4a] sm:$0xff]
      %v601 = vld [vmem:[%s537 + $0x52] sm:$0xff]
      %v602 = vlaneseq
      %v603 = vshrl.u32 %v602, 7
      %v604 = vsub.s32 2, %v603
      %v605 = vrot.slane %v364, %v604
      %v606 = vmul.f32 %v594, %v605
      %v607 = vmul.f32 %v595, %v605
      %v608 = vmul.f32 %v596, %v605
      %v609 = vmul.f32 %v597, %v605
      %v610 = vmul.f32 %v598, %v605
      %v611 = vmul.f32 %v599, %v605
      %v612 = vmul.f32 %v600, %v605
      %v613 = vmul.f32 %v601, %v605
      %v614 = vadd.f32 %v586, %v606
      %v615 = vadd.f32 %v587, %v607
      %v616 = vadd.f32 %v588, %v608
      %v617 = vadd.f32 %v589, %v609
      %v618 = vadd.f32 %v590, %v610
      %v619 = vadd.f32 %v591, %v611
      %v620 = vadd.f32 %v592, %v612
      %v621 = vadd.f32 %v593, %v613
      %v623 = vlaneseq
      %v624 = vshrl.u32 %v623, 7
      %v625 = vsub.s32 0, %v624
      %v626 = vrot.slane %v365, %v625
      %v628 = vadd.f32 %v614, %v626
      %v629 = vadd.f32 %v615, %v626
      %v630 = vadd.f32 %v616, %v626
      %v631 = vadd.f32 %v617, %v626
      %v632 = vadd.f32 %v618, %v626
      %v633 = vadd.f32 %v619, %v626
      %v634 = vadd.f32 %v620, %v626
      %v635 = vadd.f32 %v621, %v626
      %v636 = vmax.f32 %v628, 0.0
      %v637 = vmax.f32 %v629, 0.0
      %v638 = vmax.f32 %v630, 0.0
      %v639 = vmax.f32 %v631, 0.0
      %v640 = vmax.f32 %v632, 0.0
      %v641 = vmax.f32 %v633, 0.0
      %v642 = vmax.f32 %v634, 0.0
      %v643 = vmax.f32 %v635, 0.0
      %v644 = vmin.f32 %v636, 6.0
      %v645 = vmin.f32 %v637, 6.0
      %v646 = vmin.f32 %v638, 6.0
      %v647 = vmin.f32 %v639, 6.0
      %v648 = vmin.f32 %v640, 6.0
      %v649 = vmin.f32 %v641, 6.0
      %v650 = vmin.f32 %v642, 6.0
      %v651 = vmin.f32 %v643, 6.0
      %v652 = vpack.c.bf16 %v645, %v644
      %v653 = vpack.c.bf16 %v647, %v646
      %v654 = vpack.c.bf16 %v649, %v648
      %v655 = vpack.c.bf16 %v651, %v650
      %v657 = vlaneseq
      %v658 = vshrl.u32 %v657, 7
      %v659 = vsub.s32 0, %v658
      %v660 = vrot.slane %v367, %v659
      %vm662 = vcmask 64512
      %v664 = vsel %vm662, %v652, 0
      %v667 = vsel %vm662, %v653, 0
      %v670 = vsel %vm662, %v654, 0
      %v673 = vsel %vm662, %v655, 0
      %vm675 = vcmask 1043456
      %v677 = vsel %vm675, %v366, 0
      %679 = vmatprep.subr.bf16.mxu0 0
      %680 = vmatpush1.bf16.msra.mxu0 %v677
      %681 = vmatprep.subr.bf16.mxu0 0
      %682 = vmatpush1.bf16.msra.mxu0 0
      %683 = vmatprep.subr.bf16.mxu0 0
      %684 = vmatpush1.bf16.msra.mxu0 0
      %685 = vmatprep.subr.bf16.mxu0 0
      %686 = vmatpush1.bf16.msra.mxu0 0
      %687 = vmatprep.subr.bf16.mxu0 0
      %688 = vmatpush1.bf16.msra.mxu0 0
      %689 = vmatprep.subr.bf16.mxu0 0
      %690 = vmatpush1.bf16.msra.mxu0 0
      %691 = vmatprep.subr.bf16.mxu0 0
      %692 = vmatpush1.bf16.msra.mxu0 0
      %693 = vmatprep.subr.bf16.mxu0 0
      %694 = vmatpush1.bf16.msra.mxu0 0
      %695 = vmatprep.subr.bf16.mxu0 0
      %696 = vmatpush1.bf16.msra.mxu0 0
      %697 = vmatprep.subr.bf16.mxu0 0
      %698 = vmatpush1.bf16.msra.mxu0 0
      %699 = vmatprep.subr.bf16.mxu0 0
      %700 = vmatpush1.bf16.msra.mxu0 0
      %701 = vmatprep.subr.bf16.mxu0 0
      %702 = vmatpush1.bf16.msra.mxu0 0
      %703 = vmatprep.subr.bf16.mxu0 0
      %704 = vmatpush1.bf16.msra.mxu0 0
      %705 = vmatprep.subr.bf16.mxu0 0
      %706 = vmatpush1.bf16.msra.mxu0 0
      %707 = vmatprep.subr.bf16.mxu0 0
      %708 = vmatpush1.bf16.msra.mxu0 0
      %709 = vmatprep.subr.bf16.mxu0 0
      %710 = vmatpush1.bf16.msra.mxu0 0
      %711 = vmatprep.mubr.bf16.mxu0 0
      %712 = vmatmul.mubr.bf16.gmra.mrb[0].mxu0 %v664
      %v713 = vpop.f32.mrb[0].mxu0
      %v714 = vadd.f32 %v660, %v713
      %v715 = vpop.f32.mrb[0].mxu0
      %v716 = vpop.f32.mrb[0].mxu0
      %v717 = vadd.f32 %v660, %v716
      %v718 = vpop.f32.mrb[0].mxu0
      %719 = vmatprep.mubr.bf16.mxu0 0
      %720 = vmatmul.mubr.bf16.gmra.mrb[0].mxu0 %v667
      %v721 = vpop.f32.mrb[0].mxu0
      %v722 = vadd.f32 %v660, %v721
      %v723 = vpop.f32.mrb[0].mxu0
      %v724 = vpop.f32.mrb[0].mxu0
      %v725 = vadd.f32 %v660, %v724
      %v726 = vpop.f32.mrb[0].mxu0
      %727 = vmatprep.mubr.bf16.mxu0 0
      %728 = vmatmul.mubr.bf16.gmra.mrb[0].mxu0 %v670
      %v729 = vpop.f32.mrb[0].mxu0
      %v730 = vadd.f32 %v660, %v729
      %v731 = vpop.f32.mrb[0].mxu0
      %v732 = vpop.f32.mrb[0].mxu0
      %v733 = vadd.f32 %v660, %v732
      %v734 = vpop.f32.mrb[0].mxu0
      %735 = vmatprep.mubr.bf16.mxu0 0
      %736 = vmatmul.mubr.bf16.gmra.mrb[0].mxu0 %v673
      %v737 = vpop.f32.mrb[0].mxu0
      %v738 = vadd.f32 %v660, %v737
      %v739 = vpop.f32.mrb[0].mxu0
      %v740 = vpop.f32.mrb[0].mxu0
      %v741 = vadd.f32 %v660, %v740
      %v742 = vpop.f32.mrb[0].mxu0
      %743 = vdwg.mxu0
      %s744 = smul.u32 %s21, 4
      %s745 = smul.u32 %s744, 16
      %s746 = scalar_lea.vmem %s238, %s745
      %v747 = vld [vmem:[%s746] sm:$0xff]
      %v748 = vld [vmem:[%s746 + $0x8] sm:$0xff]
      %v749 = vld [vmem:[%s746 + $0x10] sm:$0xff]
      %v750 = vld [vmem:[%s746 + $0x18] sm:$0xff]
      %v751 = vld [vmem:[%s746 + $0x20] sm:$0xff]
      %v752 = vld [vmem:[%s746 + $0x28] sm:$0xff]
      %v753 = vld [vmem:[%s746 + $0x30] sm:$0xff]
      %v754 = vld [vmem:[%s746 + $0x38] sm:$0xff]
      %v755 = vadd.f32 %v714, %v747
      %v756 = vadd.f32 %v717, %v748
      %v757 = vadd.f32 %v722, %v749
      %v758 = vadd.f32 %v725, %v750
      %v759 = vadd.f32 %v730, %v751
      %v760 = vadd.f32 %v733, %v752
      %v761 = vadd.f32 %v738, %v753
      %v762 = vadd.f32 %v741, %v754
      %763 = vst.msk [vmem:[%s248] sm:$0xff] %vm662, %v755
      %764 = vst.msk [vmem:[%s248 + $0x8] sm:$0xff] %vm662, %v756
      %765 = vst.msk [vmem:[%s248 + $0x10] sm:$0xff] %vm662, %v757
      %766 = vst.msk [vmem:[%s248 + $0x18] sm:$0xff] %vm662, %v758
      %767 = vst.msk [vmem:[%s248 + $0x20] sm:$0xff] %vm662, %v759
      %768 = vst.msk [vmem:[%s248 + $0x28] sm:$0xff] %vm662, %v760
      %769 = vst.msk [vmem:[%s248 + $0x30] sm:$0xff] %vm662, %v761
      %770 = vst.msk [vmem:[%s248 + $0x38] sm:$0xff] %vm662, %v762
      %s771 = smul.u32 4, %s21
      %p772 = scmp.lt.s32.totalorder %s20, 1
      %s773 = scalar_select %p772, %s20, 1
      %p774 = scmp.lt.s32.totalorder %s771, 15
      %s775 = scalar_select %p774, %s771, 15
      %s776 = smul.addr %s775, 2
      %s777 = smul.addr %s773, 32
      %s778 = sadd.s32 %s776, %s777
      %s779 = smul.addr %s778, 8
      %s780 = scalar_lea.vmem %s5, %s779
      // Predicated region
      $region53: #{tpu_custom_call.1} parent=39 // pred_check
        %p781 = pneg %p158
      $region54: #{tpu_custom_call.1} parent=39 // pred_check_branch
        %783 = sbr.rel (%p781) target = $region56
      $region55: #{tpu_custom_call.1} parent=39 // pred_region
        %s784 = smul.u32 4, %s21
      $region56: #{tpu_custom_call.1} parent=39 // pred_fallthru
        _
    $region40: #{tpu_custom_call.1} parent=5 // pred_fallthru
      _
    %p785 = scmp.le.s32.totalorder 2, %s11
    // Predicated region
    $region57: #{tpu_custom_call.1} parent=5 // pred_check
      %p786 = pneg %p785
    $region58: #{tpu_custom_call.1} parent=5 // pred_check_branch
      %788 = sbr.rel (%p786) target = $region60
    $region59: #{tpu_custom_call.1} parent=5 // pred_region
      %s789 = ssub.s32 %s11, 2
      // Predicated region
      $region61: #{tpu_custom_call.1} parent=59 // pred_check
        %p790 = pneg %p164
      $region62: #{tpu_custom_call.1} parent=59 // pred_check_branch
        %792 = sbr.rel (%p790) target = $region64
      $region63: #{tpu_custom_call.1} parent=59 // pred_region
        %s793 = smul.u32 4, %s23
        %p794 = scmp.lt.s32.totalorder %s22, 1
        %s795 = scalar_select %p794, %s22, 1
        %p796 = scmp.lt.s32.totalorder %s793, 15
        %s797 = scalar_select %p796, %s793, 15
        %s798 = smul.addr %s797, 2
        %s799 = smul.addr %s795, 32
        %s800 = sadd.s32 %s798, %s799
        %s801 = smul.addr %s800, 8
        %s802 = scalar_lea.vmem %s5, %s801
      $region64: #{tpu_custom_call.1} parent=59 // pred_fallthru
        _
    $region60: #{tpu_custom_call.1} parent=5 // pred_fallthru
      _
  $region6: #{tpu_custom_call.1} parent=0 // loop_footer
    %s15 = sadd.s32 1, %s11
  $region7: #{tpu_custom_call.1} parent=0 // loop_footer_branch
    %10 = sbr.rel target = $region3
  $region8: #{tpu_custom_call.1} parent=0 // loop_exit
    _

</llo_original>
